<compile_context>
chip_gen: v6e
topology: v6e:2x2x1
jax: 0.10.0
libtpu: 0.0.40
codegen_flags: <defaults>
</compile_context>

<pallas_src>
import numpy as np
import jax
import jax.numpy as jnp
from jax.experimental import pallas as pl
from jax.experimental.pallas import tpu as pltpu


def _round_up(x, m):
    return ((x + m - 1) // m) * m


def mkr_forward_kernel(x_ref, w1t_ref, b1_ref, w2t_ref, b2_ref, cac_p_ref, out_ref):
    """One batch tile of the MKR forward pass.

    x_ref      : (TB, 3*dim)  packed [users | items | ents]  (bf16 or f32)
    w1t/w2t    : (dim, dim)   pre-transposed torch Linear weights (f32)
    b1/b2      : (1, dim)
    cac_p_ref  : (L, 4, dim)  rows = [w_vv+w_ev, w_vv+w_ve, b_v, b_e] (pre-folded)
    out_ref    : (1, 1, TB)   lane-dense predictions for this tile
    """
    dim = w1t_ref.shape[0]

    # Single lane-dense load, upcast once right after load.
    x = x_ref[...].astype(jnp.float32)           # (TB, 3*dim)
    u = x[:, 0:dim]                              # (TB, dim)
    v = x[:, dim:2 * dim]
    e = x[:, 2 * dim:3 * dim]

    # user MLP (MLP2): relu(x @ W1^T + b1) -> relu(. @ W2^T + b2)
    h = jnp.dot(u, w1t_ref[...], preferred_element_type=jnp.float32) + b1_ref[...]
    h = jnp.maximum(h, 0.0)
    u_L = jnp.dot(h, w2t_ref[...], preferred_element_type=jnp.float32) + b2_ref[...]
    u_L = jnp.maximum(u_L, 0.0)

    # Cross&Compress stack. C[b,i,j] = e[b,i]*v[b,j]; C @ w collapses exactly to
    # e * (v . w) (rank-1), so compute it factored with the scalars pre-folded.
    cp = cac_p_ref[...]                          # (L, 4, dim)
    for layer in range(cp.shape[0]):             # L is small & static -> unroll
        row = cp[layer]                          # (4, dim)
        w_v = row[0:1, :]                        # w_vv + w_ev
        w_e = row[1:2, :]                        # w_vv + w_ve
        b_v = row[2:3, :]
        b_e = row[3:4, :]
        s_v = jnp.sum(v * w_v, axis=1, keepdims=True)   # (TB, 1)
        s_e = jnp.sum(v * w_e, axis=1, keepdims=True)
        v_new = e * s_v + b_v                    # (TB, dim)
        e_new = e * s_e + b_e
        v, e = v_new, e_new

    # predicts = (u_L * v_L).sum(dim=1), written lane-dense (batch on lanes).
    # Done as ones(1,dim) @ prod^T on the (otherwise idle) MXU so the result is
    # produced directly in (1, TB) layout instead of a masked width-1 store.
    prod = u_L * v                               # (TB, dim) f32
    pred = jax.lax.dot_general(
        jnp.ones((1, dim), jnp.float32), prod,
        dimension_numbers=(((1,), (1,)), ((), ())),
        preferred_element_type=jnp.float32)      # (1, TB)
    out_ref[...] = pred[None]                    # (1, 1, TB)


def mkr_forward(users, items, ents, W1, b1, W2, b2, cac_p,
                *, tb=1024, in_dtype=jnp.bfloat16):
    """users/items/ents: (B, dim); W1/W2: (dim, dim) torch-Linear layout (out, in);
    b1/b2: (dim,); cac_p: (L, 5, dim) rows=[w_vv, w_ev, w_ve, b_v, b_e].
    Returns (B,) f32 predictions."""
    B, dim = users.shape
    L = cac_p.shape[0]
    f32 = jnp.float32

    # Lane-dense output blocks want tb to be a multiple of 128; clamp so tiny
    # batches are not over-padded, and zero-pad the tail so B need not divide tb.
    tb = max(128, (int(tb) // 128) * 128)
    tb = min(tb, _round_up(B, 128))
    Bp = _round_up(B, tb)
    num_tiles = Bp // tb

    # Pack the three streamed inputs into one lane-dense slab:
    # lanes [0:dim)=users, [dim:2dim)=items, [2dim:3dim)=ents.  Stored bf16 in
    # HBM (halves streamed bytes); compute is f32 inside the kernel.
    x = jnp.concatenate([users, items, ents], axis=1).astype(in_dtype)   # (B, 3*dim)
    if Bp != B:
        x = jnp.pad(x, ((0, Bp - B), (0, 0)))

    # Pre-fold the rank-1 CAC scalars (done once, on the tiny param tensor):
    #   v_new = e*(v.(w_vv+w_ev)) + b_v ;  e_new = e*(v.(w_vv+w_ve)) + b_e
    cac_folded = jnp.stack(
        [cac_p[:, 0] + cac_p[:, 1],    # w_vv + w_ev
         cac_p[:, 0] + cac_p[:, 2],    # w_vv + w_ve
         cac_p[:, 3],                  # b_v
         cac_p[:, 4]],                 # b_e
        axis=1).astype(f32)            # (L, 4, dim)

    # VMEM per tile (tb=1024, dim=32): 2 x (1024x96) bf16 input buffers ~= 384 KiB
    # plus tiny weights/output -> far below every generation's scoped VMEM limit,
    # so no vmem override needed.
    out = pl.pallas_call(
        mkr_forward_kernel,
        out_shape=jax.ShapeDtypeStruct((num_tiles, 1, tb), f32),
        grid_spec=pltpu.PrefetchScalarGridSpec(
            num_scalar_prefetch=0,
            grid=(num_tiles,),
            in_specs=[
                pl.BlockSpec((tb, 3 * dim), lambda i: (i, 0)),      # packed inputs
                pl.BlockSpec((dim, dim), lambda i: (0, 0)),          # W1^T
                pl.BlockSpec((1, dim), lambda i: (0, 0)),            # b1
                pl.BlockSpec((dim, dim), lambda i: (0, 0)),          # W2^T
                pl.BlockSpec((1, dim), lambda i: (0, 0)),            # b2
                pl.BlockSpec((L, 4, dim), lambda i: (0, 0, 0)),      # folded CAC params
            ],
            out_specs=pl.BlockSpec((1, 1, tb), lambda i: (i, 0, 0)),
        ),
        compiler_params=pltpu.CompilerParams(
            dimension_semantics=("parallel",)),   # lets v7x shard tiles on 2 TCs
    )(x,
      W1.T.astype(f32), b1[None, :].astype(f32),
      W2.T.astype(f32), b2[None, :].astype(f32),
      cac_folded)
    return out.reshape(-1)[:B]


def reference_forward(users, items, ents, W1, b1, W2, b2, cac_p):
    """Pure-JAX mirror of the literal PyTorch math (explicit outer product)."""
    B, dim = users.shape
    u = jnp.maximum(users @ W1.T + b1, 0.0)
    u = jnp.maximum(u @ W2.T + b2, 0.0)
    v = items.reshape(B, 1, dim)
    e = ents.reshape(B, 1, dim)
    for layer in range(cac_p.shape[0]):
        w_vv = cac_p[layer, 0][:, None]   # (dim, 1)
        w_ev = cac_p[layer, 1][:, None]
        w_ve = cac_p[layer, 2][:, None]
        b_v = cac_p[layer, 3][:, None]
        b_e = cac_p[layer, 4][:, None]
        C = jnp.matmul(e.reshape(B, dim, 1), v)                  # (B, dim, dim)
        v_new = jnp.matmul(C, w_vv) + jnp.matmul(C, w_ev) + b_v  # (B, dim, 1)
        e_new = jnp.matmul(C, w_ve) + jnp.matmul(C, w_vv) + b_e
        v = v_new.reshape(B, 1, dim)
        e = e_new.reshape(B, 1, dim)
    return jnp.sum(u * v.reshape(B, dim), axis=1)


if __name__ == "__main__":
    dim = 32        # embedding dim
    B = 16          # batch of (user, item) pairs
    L = 2           # -> MLP2 + CAC2
    n_entities, n_user, n_item = 50, 20, 30

    key = jax.random.PRNGKey(0)
    ks = jax.random.split(key, 10)

    # Deterministic synthetic parameters (shapes match MKR.__init__).
    user_emb = 0.1 * jax.random.normal(ks[0], (n_user, dim), jnp.float32)
    rs_item_emb = 0.1 * jax.random.normal(ks[1], (n_item, dim), jnp.float32)
    e_entity_emb = 0.1 * jax.random.normal(ks[2], (n_entities, dim), jnp.float32)
    W1 = 0.1 * jax.random.normal(ks[3], (dim, dim), jnp.float32)   # torch Linear (out, in)
    b1 = 0.1 * jax.random.normal(ks[4], (dim,), jnp.float32)
    W2 = 0.1 * jax.random.normal(ks[5], (dim, dim), jnp.float32)
    b2 = 0.1 * jax.random.normal(ks[6], (dim,), jnp.float32)
    # Per CrossAndCompressUnit: [w_vv, w_ev, w_ve, b_v, b_e], each (dim,)
    cac_p = 0.1 * jax.random.normal(ks[7], (L, 5, dim), jnp.float32)

    # "data" = list of (user_idx, item_idx) pairs; the gather is glue in plain JAX.
    user_ids = jax.random.randint(ks[8], (B,), 0, n_user)
    item_ids = jax.random.randint(ks[9], (B,), 0, n_item)
    users = user_emb[user_ids]            # (B, dim)
    items = rs_item_emb[item_ids]         # (B, dim)  -> view (B,1,dim) in torch
    ents = e_entity_emb[item_ids]         # (B, dim)  -> view (B,1,dim) in torch

    preds = jax.block_until_ready(
        mkr_forward(users, items, ents, W1, b1, W2, b2, cac_p))

    # Reference uses the same bf16-rounded streamed inputs the kernel stores in HBM.
    q = lambda a: a.astype(jnp.bfloat16).astype(jnp.float32)
    ref = jax.block_until_ready(
        reference_forward(q(users), q(items), q(ents), W1, b1, W2, b2, cac_p))

    assert preds.shape == (B,)
    np.testing.assert_allclose(np.asarray(preds), np.asarray(ref),
                               rtol=2e-4, atol=1e-5)

    # Exercise multi-tile grid + tail padding (B not a multiple of the batch tile).
    B2 = 200
    k2 = jax.random.split(jax.random.PRNGKey(1), 3)
    users2 = 0.1 * jax.random.normal(k2[0], (B2, dim), jnp.float32)
    items2 = 0.1 * jax.random.normal(k2[1], (B2, dim), jnp.float32)
    ents2 = 0.1 * jax.random.normal(k2[2], (B2, dim), jnp.float32)
    preds2 = jax.block_until_ready(
        mkr_forward(users2, items2, ents2, W1, b1, W2, b2, cac_p, tb=128))
    ref2 = jax.block_until_ready(
        reference_forward(q(users2), q(items2), q(ents2), W1, b1, W2, b2, cac_p))
    assert preds2.shape == (B2,)
    np.testing.assert_allclose(np.asarray(preds2), np.asarray(ref2),
                               rtol=2e-4, atol=1e-5)

    print("KERNEL_OK")
</pallas_src>

<mosaic_0001>
module attributes {stable_mosaic.version = 11 : i64} {
  func.func @mkr_forward_kernel(%arg0: i32, %arg1: memref<128x96xbf16, #tpu.memory_space<vmem>>, %arg2: memref<32x32xf32, #tpu.memory_space<vmem>>, %arg3: memref<1x32xf32, #tpu.memory_space<vmem>>, %arg4: memref<32x32xf32, #tpu.memory_space<vmem>>, %arg5: memref<1x32xf32, #tpu.memory_space<vmem>>, %arg6: memref<2x4x32xf32, #tpu.memory_space<vmem>>, %arg7: memref<1x1x128xf32, #tpu.memory_space<vmem>>) attributes {dimension_semantics = [#tpu.dimension_semantics<parallel>], iteration_bounds = array<i64: 1>, scalar_prefetch = 0 : i64, scratch_operands = 0 : i64, tpu.core_type = #tpu.core_type<tc>, window_params = [{transform_indices = @transform_0, window_bounds = array<i64: 128, 96>}, {pipeline_mode = #tpu.pipeline_mode<synchronous>, transform_indices = @transform_1, window_bounds = array<i64: 32, 32>}, {pipeline_mode = #tpu.pipeline_mode<synchronous>, transform_indices = @transform_2, window_bounds = array<i64: 1, 32>}, {pipeline_mode = #tpu.pipeline_mode<synchronous>, transform_indices = @transform_3, window_bounds = array<i64: 32, 32>}, {pipeline_mode = #tpu.pipeline_mode<synchronous>, transform_indices = @transform_4, window_bounds = array<i64: 1, 32>}, {pipeline_mode = #tpu.pipeline_mode<synchronous>, transform_indices = @transform_5, window_bounds = array<i64: 2, 4, 32>}, {transform_indices = @transform_6, window_bounds = array<i64: 1, 1, 128>}]} {
    %c0 = arith.constant 0 : index
    %c0_0 = arith.constant 0 : index
    %0 = vector.load %arg1[%c0, %c0_0] : memref<128x96xbf16, #tpu.memory_space<vmem>>, vector<128x96xbf16>
    %1 = arith.extf %0 : vector<128x96xbf16> to vector<128x96xf32>
    %2 = vector.extract_strided_slice %1 {offsets = [0, 0], sizes = [128, 32], strides = [1, 1]} : vector<128x96xf32> to vector<128x32xf32>
    %3 = vector.extract_strided_slice %1 {offsets = [0, 32], sizes = [128, 32], strides = [1, 1]} : vector<128x96xf32> to vector<128x32xf32>
    %4 = vector.extract_strided_slice %1 {offsets = [0, 64], sizes = [128, 32], strides = [1, 1]} : vector<128x96xf32> to vector<128x32xf32>
    %c0_1 = arith.constant 0 : index
    %c0_2 = arith.constant 0 : index
    %5 = vector.load %arg2[%c0_1, %c0_2] : memref<32x32xf32, #tpu.memory_space<vmem>>, vector<32x32xf32>
    %cst = arith.constant dense<0.000000e+00> : vector<128x32xf32>
    %6 = tpu.matmul %2, %5, %cst {dimension_numbers = #tpu.dot_dimension_numbers<[1], [0], [0], [1], [0, 0, 1, 1], [], []>} : vector<128x32xf32>, vector<32x32xf32>, vector<128x32xf32> -> vector<128x32xf32>
    %c0_3 = arith.constant 0 : index
    %c0_4 = arith.constant 0 : index
    %7 = vector.load %arg3[%c0_3, %c0_4] : memref<1x32xf32, #tpu.memory_space<vmem>>, vector<1x32xf32>
    %8 = vector.broadcast %7 : vector<1x32xf32> to vector<128x32xf32>
    %9 = arith.addf %6, %8 : vector<128x32xf32>
    %cst_5 = arith.constant 0.000000e+00 : f32
    %10 = vector.broadcast %cst_5 : f32 to vector<128x32xf32>
    %11 = arith.maximumf %9, %10 : vector<128x32xf32>
    %c0_6 = arith.constant 0 : index
    %c0_7 = arith.constant 0 : index
    %12 = vector.load %arg4[%c0_6, %c0_7] : memref<32x32xf32, #tpu.memory_space<vmem>>, vector<32x32xf32>
    %cst_8 = arith.constant dense<0.000000e+00> : vector<128x32xf32>
    %13 = tpu.matmul %11, %12, %cst_8 {dimension_numbers = #tpu.dot_dimension_numbers<[1], [0], [0], [1], [0, 0, 1, 1], [], []>} : vector<128x32xf32>, vector<32x32xf32>, vector<128x32xf32> -> vector<128x32xf32>
    %c0_9 = arith.constant 0 : index
    %c0_10 = arith.constant 0 : index
    %14 = vector.load %arg5[%c0_9, %c0_10] : memref<1x32xf32, #tpu.memory_space<vmem>>, vector<1x32xf32>
    %15 = vector.broadcast %14 : vector<1x32xf32> to vector<128x32xf32>
    %16 = arith.addf %13, %15 : vector<128x32xf32>
    %cst_11 = arith.constant 0.000000e+00 : f32
    %17 = vector.broadcast %cst_11 : f32 to vector<128x32xf32>
    %18 = arith.maximumf %16, %17 : vector<128x32xf32>
    %c0_12 = arith.constant 0 : index
    %c0_13 = arith.constant 0 : index
    %c0_14 = arith.constant 0 : index
    %19 = vector.load %arg6[%c0_12, %c0_13, %c0_14] : memref<2x4x32xf32, #tpu.memory_space<vmem>>, vector<2x4x32xf32>
    %20 = vector.extract_strided_slice %19 {offsets = [0, 0, 0], sizes = [1, 4, 32], strides = [1, 1, 1]} : vector<2x4x32xf32> to vector<1x4x32xf32>
    %21 = vector.shape_cast %20 : vector<1x4x32xf32> to vector<4x32xf32>
    %22 = vector.extract_strided_slice %21 {offsets = [0, 0], sizes = [1, 32], strides = [1, 1]} : vector<4x32xf32> to vector<1x32xf32>
    %23 = vector.extract_strided_slice %21 {offsets = [1, 0], sizes = [1, 32], strides = [1, 1]} : vector<4x32xf32> to vector<1x32xf32>
    %24 = vector.extract_strided_slice %21 {offsets = [2, 0], sizes = [1, 32], strides = [1, 1]} : vector<4x32xf32> to vector<1x32xf32>
    %25 = vector.extract_strided_slice %21 {offsets = [3, 0], sizes = [1, 32], strides = [1, 1]} : vector<4x32xf32> to vector<1x32xf32>
    %26 = vector.broadcast %22 : vector<1x32xf32> to vector<128x32xf32>
    %27 = arith.mulf %3, %26 : vector<128x32xf32>
    %cst_15 = arith.constant dense<0.000000e+00> : vector<128xf32>
    %28 = vector.multi_reduction <add>, %27, %cst_15 [1] : vector<128x32xf32> to vector<128xf32>
    %29 = vector.shape_cast %28 : vector<128xf32> to vector<128x1xf32>
    %30 = vector.broadcast %23 : vector<1x32xf32> to vector<128x32xf32>
    %31 = arith.mulf %3, %30 : vector<128x32xf32>
    %cst_16 = arith.constant dense<0.000000e+00> : vector<128xf32>
    %32 = vector.multi_reduction <add>, %31, %cst_16 [1] : vector<128x32xf32> to vector<128xf32>
    %33 = vector.shape_cast %32 : vector<128xf32> to vector<128x1xf32>
    %34 = vector.broadcast %29 : vector<128x1xf32> to vector<128x32xf32>
    %35 = arith.mulf %4, %34 : vector<128x32xf32>
    %36 = vector.broadcast %24 : vector<1x32xf32> to vector<128x32xf32>
    %37 = arith.addf %35, %36 : vector<128x32xf32>
    %38 = vector.broadcast %33 : vector<128x1xf32> to vector<128x32xf32>
    %39 = arith.mulf %4, %38 : vector<128x32xf32>
    %40 = vector.broadcast %25 : vector<1x32xf32> to vector<128x32xf32>
    %41 = arith.addf %39, %40 : vector<128x32xf32>
    %42 = vector.extract_strided_slice %19 {offsets = [1, 0, 0], sizes = [1, 4, 32], strides = [1, 1, 1]} : vector<2x4x32xf32> to vector<1x4x32xf32>
    %43 = vector.shape_cast %42 : vector<1x4x32xf32> to vector<4x32xf32>
    %44 = vector.extract_strided_slice %43 {offsets = [0, 0], sizes = [1, 32], strides = [1, 1]} : vector<4x32xf32> to vector<1x32xf32>
    %45 = vector.extract_strided_slice %43 {offsets = [2, 0], sizes = [1, 32], strides = [1, 1]} : vector<4x32xf32> to vector<1x32xf32>
    %46 = vector.broadcast %44 : vector<1x32xf32> to vector<128x32xf32>
    %47 = arith.mulf %37, %46 : vector<128x32xf32>
    %cst_17 = arith.constant dense<0.000000e+00> : vector<128xf32>
    %48 = vector.multi_reduction <add>, %47, %cst_17 [1] : vector<128x32xf32> to vector<128xf32>
    %49 = vector.shape_cast %48 : vector<128xf32> to vector<128x1xf32>
    %50 = vector.broadcast %49 : vector<128x1xf32> to vector<128x32xf32>
    %51 = arith.mulf %41, %50 : vector<128x32xf32>
    %52 = vector.broadcast %45 : vector<1x32xf32> to vector<128x32xf32>
    %53 = arith.addf %51, %52 : vector<128x32xf32>
    %54 = arith.mulf %18, %53 : vector<128x32xf32>
    %cst_18 = arith.constant 1.000000e+00 : f32
    %55 = vector.broadcast %cst_18 : f32 to vector<1x32xf32>
    %cst_19 = arith.constant dense<0.000000e+00> : vector<1x128xf32>
    %56 = tpu.matmul %55, %54, %cst_19 {dimension_numbers = #tpu.dot_dimension_numbers<[1], [1], [0], [0], [0, 0, 1, 0], [], []>} : vector<1x32xf32>, vector<128x32xf32>, vector<1x128xf32> -> vector<1x128xf32>
    %57 = vector.shape_cast %56 : vector<1x128xf32> to vector<1x1x128xf32>
    %c0_20 = arith.constant 0 : index
    %c0_21 = arith.constant 0 : index
    %c0_22 = arith.constant 0 : index
    %58 = vector.load %arg7[%c0_20, %c0_21, %c0_22] : memref<1x1x128xf32, #tpu.memory_space<vmem>>, vector<1x1x128xf32>
    tpu.vector_store %arg7[%c0_20, %c0_21, %c0_22], %57 {strides = array<i32>} : memref<1x1x128xf32, #tpu.memory_space<vmem>>, vector<1x1x128xf32>,
    return
  }
  func.func @transform_0(%arg0: i32) -> (i32, i32) {
    %c0_i32 = arith.constant 0 : i32
    %c0_i32_0 = arith.constant 0 : i32
    return %arg0, %c0_i32 : i32, i32
  }
  func.func @transform_1(%arg0: i32) -> (i32, i32) {
    %c0_i32 = arith.constant 0 : i32
    %c0_i32_0 = arith.constant 0 : i32
    %c0_i32_1 = arith.constant 0 : i32
    return %c0_i32, %c0_i32_0 : i32, i32
  }
  func.func @transform_2(%arg0: i32) -> (i32, i32) {
    %c0_i32 = arith.constant 0 : i32
    %c0_i32_0 = arith.constant 0 : i32
    %c0_i32_1 = arith.constant 0 : i32
    return %c0_i32, %c0_i32_0 : i32, i32
  }
  func.func @transform_3(%arg0: i32) -> (i32, i32) {
    %c0_i32 = arith.constant 0 : i32
    %c0_i32_0 = arith.constant 0 : i32
    %c0_i32_1 = arith.constant 0 : i32
    return %c0_i32, %c0_i32_0 : i32, i32
  }
  func.func @transform_4(%arg0: i32) -> (i32, i32) {
    %c0_i32 = arith.constant 0 : i32
    %c0_i32_0 = arith.constant 0 : i32
    %c0_i32_1 = arith.constant 0 : i32
    return %c0_i32, %c0_i32_0 : i32, i32
  }
  func.func @transform_5(%arg0: i32) -> (i32, i32, i32) {
    %c0_i32 = arith.constant 0 : i32
    %c0_i32_0 = arith.constant 0 : i32
    %c0_i32_1 = arith.constant 0 : i32
    %c0_i32_2 = arith.constant 0 : i32
    return %c0_i32, %c0_i32_0, %c0_i32_1 : i32, i32, i32
  }
  func.func @transform_6(%arg0: i32) -> (i32, i32, i32) {
    %c0_i32 = arith.constant 0 : i32
    %c0_i32_0 = arith.constant 0 : i32
    %c0_i32_1 = arith.constant 0 : i32
    return %arg0, %c0_i32, %c0_i32_0 : i32, i32, i32
  }
}

</mosaic_0001>

<llo_original>
// kernel: tpu_custom_call.1
$region0: #{tpu_custom_call.1}
  #allocation0 [shape = 'u32[]', space=smem, size = 0x4, offset = 0x4, fixed_abs, tag = 'smem constant byte address 0x4 - core index']
  #allocation1 [shape = 'u32[144,128]{1,0:T(1,128)}', space=vmem, size = 0x12000, scoped, tag = 'internal scratch']
  %s0 = inlined_call_operand.vmem [shape: bf16[128,96], index: 0, kind: input, shape index: {}]
  %s1 = inlined_call_operand.vmem [shape: f32[32,32], index: 1, kind: input, shape index: {}]
  %s2 = inlined_call_operand.vmem [shape: f32[1,32], index: 2, kind: input, shape index: {}]
  %s3 = inlined_call_operand.vmem [shape: f32[32,32], index: 3, kind: input, shape index: {}]
  %s4 = inlined_call_operand.vmem [shape: f32[1,32], index: 4, kind: input, shape index: {}]
  %s5 = inlined_call_operand.vmem [shape: f32[2,4,32], index: 5, kind: input, shape index: {}]
  %s6 = inlined_call_operand.hbm [shape: f32[1,1,128], index: 6, kind: output, shape index: {}]
  %s7 = sld [smem:[#allocation0]]
  $region34: #{tpu_custom_call.1} parent=0
    _
  %s9 = ssub.s32 1, %s7
  %s10 = scalar_select 0, %s9, %s7
  $region1: #{tpu_custom_call.1} parent=0
    #allocation2 [shape = 'u8[512]{0}', space=vmem, size = 0x400, scoped, tag = 'output window, operand 0, single buffered']
    #allocation3 [shape = 's32[1]{0}', space=sflag, size = 0x4, scoped, tag = 'scoped memory for tpu_custom_call.1']
    %11 = vsyncpa [#allocation3], 0
    // Predicated region
    $region2: #{tpu_custom_call.1} parent=1 // pred_check
      _
    $region3: #{tpu_custom_call.1} parent=1 // pred_check_branch
      %13 = sbr.rel (0) target = $region5
    $region4: #{tpu_custom_call.1} parent=1 // pred_region
      _
    $region5: #{tpu_custom_call.1} parent=1 // pred_fallthru
      _
    // Predicated region
    $region6: #{tpu_custom_call.1} parent=1 // pred_check
      _
    $region7: #{tpu_custom_call.1} parent=1 // pred_check_branch
      %15 = sbr.rel (0) target = $region9
    $region8: #{tpu_custom_call.1} parent=1 // pred_region
      _
    $region9: #{tpu_custom_call.1} parent=1 // pred_fallthru
      _
    // Predicated region
    $region10: #{tpu_custom_call.1} parent=1 // pred_check
      _
    $region11: #{tpu_custom_call.1} parent=1 // pred_check_branch
      %17 = sbr.rel (0) target = $region13
    $region12: #{tpu_custom_call.1} parent=1 // pred_region
      _
    $region13: #{tpu_custom_call.1} parent=1 // pred_fallthru
      _
    // Predicated region
    $region14: #{tpu_custom_call.1} parent=1 // pred_check
      _
    $region15: #{tpu_custom_call.1} parent=1 // pred_check_branch
      %19 = sbr.rel (0) target = $region17
    $region16: #{tpu_custom_call.1} parent=1 // pred_region
      _
    $region17: #{tpu_custom_call.1} parent=1 // pred_fallthru
      _
    // Predicated region
    $region18: #{tpu_custom_call.1} parent=1 // pred_check
      _
    $region19: #{tpu_custom_call.1} parent=1 // pred_check_branch
      %21 = sbr.rel (0) target = $region21
    $region20: #{tpu_custom_call.1} parent=1 // pred_region
      _
    $region21: #{tpu_custom_call.1} parent=1 // pred_fallthru
      _
    // Predicated region
    $region22: #{tpu_custom_call.1} parent=1 // pred_check
      _
    $region23: #{tpu_custom_call.1} parent=1 // pred_check_branch
      %23 = sbr.rel (0) target = $region25
    $region24: #{tpu_custom_call.1} parent=1 // pred_region
      _
    $region25: #{tpu_custom_call.1} parent=1 // pred_fallthru
      _
    %v24 = vld [vmem:[%s0] sm:$0xf]
    %v25 = vld [vmem:[%s0 + $0x4] sm:$0xf]
    %v26 = vld [vmem:[%s0 + $0x8] sm:$0xf]
    %v27 = vld [vmem:[%s0 + $0xc] sm:$0xf]
    %v28 = vld [vmem:[%s0 + $0x10] sm:$0xf]
    %v29 = vld [vmem:[%s0 + $0x14] sm:$0xf]
    %v30 = vld [vmem:[%s0 + $0x18] sm:$0xf]
    %v31 = vld [vmem:[%s0 + $0x1c] sm:$0xf]
    %v32 = vld [vmem:[%s0 + $0x20] sm:$0xf]
    %v33 = vld [vmem:[%s0 + $0x24] sm:$0xf]
    %v34 = vld [vmem:[%s0 + $0x28] sm:$0xf]
    %v35 = vld [vmem:[%s0 + $0x2c] sm:$0xf]
    %v36 = vld [vmem:[%s0 + $0x30] sm:$0xf]
    %v37 = vld [vmem:[%s0 + $0x34] sm:$0xf]
    %v38 = vld [vmem:[%s0 + $0x38] sm:$0xf]
    %v39 = vld [vmem:[%s0 + $0x3c] sm:$0xf]
    %v40 = vunpack.c.l.bf16 %v24
    %v41 = vunpack.c.l.bf16 %v25
    %v42 = vunpack.c.l.bf16 %v26
    %v43 = vunpack.c.l.bf16 %v27
    %v44 = vunpack.c.l.bf16 %v28
    %v45 = vunpack.c.l.bf16 %v29
    %v46 = vunpack.c.l.bf16 %v30
    %v47 = vunpack.c.l.bf16 %v31
    %v48 = vunpack.c.l.bf16 %v32
    %v49 = vunpack.c.l.bf16 %v33
    %v50 = vunpack.c.l.bf16 %v34
    %v51 = vunpack.c.l.bf16 %v35
    %v52 = vunpack.c.l.bf16 %v36
    %v53 = vunpack.c.l.bf16 %v37
    %v54 = vunpack.c.l.bf16 %v38
    %v55 = vunpack.c.l.bf16 %v39
    %v56 = vld [vmem:[%s1] sm:$0xff]
    %v57 = vld [vmem:[%s1 + $0x8] sm:$0xff]
    %v58 = vld [vmem:[%s1 + $0x10] sm:$0xff]
    %v59 = vld [vmem:[%s1 + $0x18] sm:$0xff]
    %v60 = vld [vmem:[%s2] sm:$0x1]
    %v62 = vlaneseq
    %v63 = vshrl.u32 %v62, 7
    %v64 = vsub.s32 0, %v63
    %v65 = vrot.slane %v60, %v64
    %vm67 = vcmask 261120
    %v69 = vsel %vm67, %v40, 0
    %v72 = vsel %vm67, %v41, 0
    %v75 = vsel %vm67, %v42, 0
    %v78 = vsel %vm67, %v43, 0
    %v81 = vsel %vm67, %v44, 0
    %v84 = vsel %vm67, %v45, 0
    %v87 = vsel %vm67, %v46, 0
    %v90 = vsel %vm67, %v47, 0
    %v93 = vsel %vm67, %v48, 0
    %v96 = vsel %vm67, %v49, 0
    %v99 = vsel %vm67, %v50, 0
    %v102 = vsel %vm67, %v51, 0
    %v105 = vsel %vm67, %v52, 0
    %v108 = vsel %vm67, %v53, 0
    %v111 = vsel %vm67, %v54, 0
    %v114 = vsel %vm67, %v55, 0
    %116 = vmatprep.subr.mxu0 0.0
    %117 = vmatpush1.msra.mxu0 0.0
    %118 = vmatprep.subr.mxu0 0.0
    %119 = vmatpush1.msra.mxu0 0.0
    %120 = vmatprep.subr.mxu0 0.0
    %121 = vmatpush1.msra.mxu0 0.0
    %122 = vmatprep.subr.mxu0 0.0
    %123 = vmatpush1.msra.mxu0 0.0
    %124 = vmatprep.subr.mxu0 0.0
    %125 = vmatpush1.msra.mxu0 0.0
    %126 = vmatprep.subr.mxu0 0.0
    %127 = vmatpush1.msra.mxu0 0.0
    %128 = vmatprep.subr.mxu0 0.0
    %129 = vmatpush1.msra.mxu0 0.0
    %130 = vmatprep.subr.mxu0 0.0
    %131 = vmatpush1.msra.mxu0 0.0
    %132 = vmatprep.subr.mxu0 0.0
    %133 = vmatpush1.msra.mxu0 0.0
    %134 = vmatprep.subr.mxu0 0.0
    %135 = vmatpush1.msra.mxu0 0.0
    %136 = vmatprep.subr.mxu0 0.0
    %137 = vmatpush1.msra.mxu0 0.0
    %138 = vmatprep.subr.mxu0 0.0
    %139 = vmatpush1.msra.mxu0 0.0
    %140 = vmatprep.subr.mxu0 0.0
    %141 = vmatpush1.msra.mxu0 %v59
    %142 = vmatprep.subr.mxu0 0.0
    %143 = vmatpush1.msra.mxu0 %v58
    %144 = vmatprep.subr.mxu0 0.0
    %145 = vmatpush1.msra.mxu0 %v57
    %146 = vmatprep.subr.mxu0 0.0
    %147 = vmatpush1.msra.mxu0 %v56
    %148 = vmatprep.subr.mxu0 0.0
    %149 = vmatpush2.msra.mxu0 0.0
    %150 = vmatprep.subr.mxu0 0.0
    %151 = vmatpush2.msra.mxu0 0.0
    %152 = vmatprep.subr.mxu0 0.0
    %153 = vmatpush2.msra.mxu0 0.0
    %154 = vmatprep.subr.mxu0 0.0
    %155 = vmatpush2.msra.mxu0 0.0
    %156 = vmatprep.subr.mxu0 0.0
    %157 = vmatpush2.msra.mxu0 0.0
    %158 = vmatprep.subr.mxu0 0.0
    %159 = vmatpush2.msra.mxu0 0.0
    %160 = vmatprep.subr.mxu0 0.0
    %161 = vmatpush2.msra.mxu0 0.0
    %162 = vmatprep.subr.mxu0 0.0
    %163 = vmatpush2.msra.mxu0 0.0
    %164 = vmatprep.subr.mxu0 0.0
    %165 = vmatpush2.msra.mxu0 0.0
    %166 = vmatprep.subr.mxu0 0.0
    %167 = vmatpush2.msra.mxu0 0.0
    %168 = vmatprep.subr.mxu0 0.0
    %169 = vmatpush2.msra.mxu0 0.0
    %170 = vmatprep.subr.mxu0 0.0
    %171 = vmatpush2.msra.mxu0 0.0
    %172 = vmatprep.subr.mxu0 0.0
    %173 = vmatpush2.msra.mxu0 0.0
    %174 = vmatprep.subr.mxu0 0.0
    %175 = vmatpush2.msra.mxu0 0.0
    %176 = vmatprep.subr.mxu0 0.0
    %177 = vmatpush2.msra.mxu0 0.0
    %178 = vmatprep.subr.mxu0 0.0
    %179 = vmatpush2.msra.mxu0 0.0
    %180 = vmatprep.mubr.f32.mxu0 0.0
    %181 = vmatmul.mubr.f32.gmra.mxu0 %v69
    %v182 = vpop.f32.mrf.mxu0
    %v183 = vadd.f32 %v65, %v182
    %v184 = vpop.f32.mrf.mxu0
    %185 = vmatprep.mubr.f32.mxu0 0.0
    %186 = vmatmul.mubr.f32.gmra.mxu0 %v72
    %v187 = vpop.f32.mrf.mxu0
    %v188 = vadd.f32 %v65, %v187
    %v189 = vpop.f32.mrf.mxu0
    %190 = vmatprep.mubr.f32.mxu0 0.0
    %191 = vmatmul.mubr.f32.gmra.mxu0 %v75
    %v192 = vpop.f32.mrf.mxu0
    %v193 = vadd.f32 %v65, %v192
    %v194 = vpop.f32.mrf.mxu0
    %195 = vmatprep.mubr.f32.mxu0 0.0
    %196 = vmatmul.mubr.f32.gmra.mxu0 %v78
    %v197 = vpop.f32.mrf.mxu0
    %v198 = vadd.f32 %v65, %v197
    %v199 = vpop.f32.mrf.mxu0
    %200 = vmatprep.mubr.f32.mxu0 0.0
    %201 = vmatmul.mubr.f32.gmra.mxu0 %v81
    %v202 = vpop.f32.mrf.mxu0
    %v203 = vadd.f32 %v65, %v202
    %v204 = vpop.f32.mrf.mxu0
    %205 = vmatprep.mubr.f32.mxu0 0.0
    %206 = vmatmul.mubr.f32.gmra.mxu0 %v84
    %v207 = vpop.f32.mrf.mxu0
    %v208 = vadd.f32 %v65, %v207
    %v209 = vpop.f32.mrf.mxu0
    %210 = vmatprep.mubr.f32.mxu0 0.0
    %211 = vmatmul.mubr.f32.gmra.mxu0 %v87
    %v212 = vpop.f32.mrf.mxu0
    %v213 = vadd.f32 %v65, %v212
    %v214 = vpop.f32.mrf.mxu0
    %215 = vmatprep.mubr.f32.mxu0 0.0
    %216 = vmatmul.mubr.f32.gmra.mxu0 %v90
    %v217 = vpop.f32.mrf.mxu0
    %v218 = vadd.f32 %v65, %v217
    %v219 = vpop.f32.mrf.mxu0
    %220 = vmatprep.mubr.f32.mxu0 0.0
    %221 = vmatmul.mubr.f32.gmra.mxu0 %v93
    %v222 = vpop.f32.mrf.mxu0
    %v223 = vadd.f32 %v65, %v222
    %v224 = vpop.f32.mrf.mxu0
    %225 = vmatprep.mubr.f32.mxu0 0.0
    %226 = vmatmul.mubr.f32.gmra.mxu0 %v96
    %v227 = vpop.f32.mrf.mxu0
    %v228 = vadd.f32 %v65, %v227
    %v229 = vpop.f32.mrf.mxu0
    %230 = vmatprep.mubr.f32.mxu0 0.0
    %231 = vmatmul.mubr.f32.gmra.mxu0 %v99
    %v232 = vpop.f32.mrf.mxu0
    %v233 = vadd.f32 %v65, %v232
    %v234 = vpop.f32.mrf.mxu0
    %235 = vmatprep.mubr.f32.mxu0 0.0
    %236 = vmatmul.mubr.f32.gmra.mxu0 %v102
    %v237 = vpop.f32.mrf.mxu0
    %v238 = vadd.f32 %v65, %v237
    %v239 = vpop.f32.mrf.mxu0
    %240 = vmatprep.mubr.f32.mxu0 0.0
    %241 = vmatmul.mubr.f32.gmra.mxu0 %v105
    %v242 = vpop.f32.mrf.mxu0
    %v243 = vadd.f32 %v65, %v242
    %v244 = vpop.f32.mrf.mxu0
    %245 = vmatprep.mubr.f32.mxu0 0.0
    %246 = vmatmul.mubr.f32.gmra.mxu0 %v108
    %v247 = vpop.f32.mrf.mxu0
    %v248 = vadd.f32 %v65, %v247
    %v249 = vpop.f32.mrf.mxu0
    %250 = vmatprep.mubr.f32.mxu0 0.0
    %251 = vmatmul.mubr.f32.gmra.mxu0 %v111
    %v252 = vpop.f32.mrf.mxu0
    %v253 = vadd.f32 %v65, %v252
    %v254 = vpop.f32.mrf.mxu0
    %255 = vmatprep.mubr.f32.mxu0 0.0
    %256 = vmatmul.mubr.f32.gmra.mxu0 %v114
    %v257 = vpop.f32.mrf.mxu0
    %v258 = vadd.f32 %v65, %v257
    %v259 = vpop.f32.mrf.mxu0
    %260 = vdwg.mxu0
    %v261 = vmax.f32 %v183, 0.0
    %v262 = vmax.f32 %v188, 0.0
    %v263 = vmax.f32 %v193, 0.0
    %v264 = vmax.f32 %v198, 0.0
    %v265 = vmax.f32 %v203, 0.0
    %v266 = vmax.f32 %v208, 0.0
    %v267 = vmax.f32 %v213, 0.0
    %v268 = vmax.f32 %v218, 0.0
    %v269 = vmax.f32 %v223, 0.0
    %v270 = vmax.f32 %v228, 0.0
    %v271 = vmax.f32 %v233, 0.0
    %v272 = vmax.f32 %v238, 0.0
    %v273 = vmax.f32 %v243, 0.0
    %v274 = vmax.f32 %v248, 0.0
    %v275 = vmax.f32 %v253, 0.0
    %v276 = vmax.f32 %v258, 0.0
    %v277 = vld [vmem:[%s3] sm:$0xff]
    %v278 = vld [vmem:[%s3 + $0x8] sm:$0xff]
    %v279 = vld [vmem:[%s3 + $0x10] sm:$0xff]
    %v280 = vld [vmem:[%s3 + $0x18] sm:$0xff]
    %v281 = vld [vmem:[%s4] sm:$0x1]
    %v283 = vlaneseq
    %v284 = vshrl.u32 %v283, 7
    %v285 = vsub.s32 0, %v284
    %v286 = vrot.slane %v281, %v285
    %v289 = vsel %vm67, %v261, 0
    %v292 = vsel %vm67, %v262, 0
    %v295 = vsel %vm67, %v263, 0
    %v298 = vsel %vm67, %v264, 0
    %v301 = vsel %vm67, %v265, 0
    %v304 = vsel %vm67, %v266, 0
    %v307 = vsel %vm67, %v267, 0
    %v310 = vsel %vm67, %v268, 0
    %v313 = vsel %vm67, %v269, 0
    %v316 = vsel %vm67, %v270, 0
    %v319 = vsel %vm67, %v271, 0
    %v322 = vsel %vm67, %v272, 0
    %v325 = vsel %vm67, %v273, 0
    %v328 = vsel %vm67, %v274, 0
    %v331 = vsel %vm67, %v275, 0
    %v334 = vsel %vm67, %v276, 0
    %336 = vmatprep.subr.mxu0 0.0
    %337 = vmatpush1.msra.mxu0 0.0
    %338 = vmatprep.subr.mxu0 0.0
    %339 = vmatpush1.msra.mxu0 0.0
    %340 = vmatprep.subr.mxu0 0.0
    %341 = vmatpush1.msra.mxu0 0.0
    %342 = vmatprep.subr.mxu0 0.0
    %343 = vmatpush1.msra.mxu0 0.0
    %344 = vmatprep.subr.mxu0 0.0
    %345 = vmatpush1.msra.mxu0 0.0
    %346 = vmatprep.subr.mxu0 0.0
    %347 = vmatpush1.msra.mxu0 0.0
    %348 = vmatprep.subr.mxu0 0.0
    %349 = vmatpush1.msra.mxu0 0.0
    %350 = vmatprep.subr.mxu0 0.0
    %351 = vmatpush1.msra.mxu0 0.0
    %352 = vmatprep.subr.mxu0 0.0
    %353 = vmatpush1.msra.mxu0 0.0
    %354 = vmatprep.subr.mxu0 0.0
    %355 = vmatpush1.msra.mxu0 0.0
    %356 = vmatprep.subr.mxu0 0.0
    %357 = vmatpush1.msra.mxu0 0.0
    %358 = vmatprep.subr.mxu0 0.0
    %359 = vmatpush1.msra.mxu0 0.0
    %360 = vmatprep.subr.mxu0 0.0
    %361 = vmatpush1.msra.mxu0 %v280
    %362 = vmatprep.subr.mxu0 0.0
    %363 = vmatpush1.msra.mxu0 %v279
    %364 = vmatprep.subr.mxu0 0.0
    %365 = vmatpush1.msra.mxu0 %v278
    %366 = vmatprep.subr.mxu0 0.0
    %367 = vmatpush1.msra.mxu0 %v277
    %368 = vmatprep.subr.mxu0 0.0
    %369 = vmatpush2.msra.mxu0 0.0
    %370 = vmatprep.subr.mxu0 0.0
    %371 = vmatpush2.msra.mxu0 0.0
    %372 = vmatprep.subr.mxu0 0.0
    %373 = vmatpush2.msra.mxu0 0.0
    %374 = vmatprep.subr.mxu0 0.0
    %375 = vmatpush2.msra.mxu0 0.0
    %376 = vmatprep.subr.mxu0 0.0
    %377 = vmatpush2.msra.mxu0 0.0
    %378 = vmatprep.subr.mxu0 0.0
    %379 = vmatpush2.msra.mxu0 0.0
    %380 = vmatprep.subr.mxu0 0.0
    %381 = vmatpush2.msra.mxu0 0.0
    %382 = vmatprep.subr.mxu0 0.0
    %383 = vmatpush2.msra.mxu0 0.0
    %384 = vmatprep.subr.mxu0 0.0
    %385 = vmatpush2.msra.mxu0 0.0
    %386 = vmatprep.subr.mxu0 0.0
    %387 = vmatpush2.msra.mxu0 0.0
    %388 = vmatprep.subr.mxu0 0.0
    %389 = vmatpush2.msra.mxu0 0.0
    %390 = vmatprep.subr.mxu0 0.0
    %391 = vmatpush2.msra.mxu0 0.0
    %392 = vmatprep.subr.mxu0 0.0
    %393 = vmatpush2.msra.mxu0 0.0
    %394 = vmatprep.subr.mxu0 0.0
    %395 = vmatpush2.msra.mxu0 0.0
    %396 = vmatprep.subr.mxu0 0.0
    %397 = vmatpush2.msra.mxu0 0.0
    %398 = vmatprep.subr.mxu0 0.0
    %399 = vmatpush2.msra.mxu0 0.0
    %400 = vmatprep.mubr.f32.mxu0 0.0
    %401 = vmatmul.mubr.f32.gmra.mxu0 %v289
    %v402 = vpop.f32.mrf.mxu0
    %v403 = vadd.f32 %v286, %v402
    %v404 = vpop.f32.mrf.mxu0
    %405 = vmatprep.mubr.f32.mxu0 0.0
    %406 = vmatmul.mubr.f32.gmra.mxu0 %v292
    %v407 = vpop.f32.mrf.mxu0
    %v408 = vadd.f32 %v286, %v407
    %v409 = vpop.f32.mrf.mxu0
    %410 = vmatprep.mubr.f32.mxu0 0.0
    %411 = vmatmul.mubr.f32.gmra.mxu0 %v295
    %v412 = vpop.f32.mrf.mxu0
    %v413 = vadd.f32 %v286, %v412
    %v414 = vpop.f32.mrf.mxu0
    %415 = vmatprep.mubr.f32.mxu0 0.0
    %416 = vmatmul.mubr.f32.gmra.mxu0 %v298
    %v417 = vpop.f32.mrf.mxu0
    %v418 = vadd.f32 %v286, %v417
    %v419 = vpop.f32.mrf.mxu0
    %420 = vmatprep.mubr.f32.mxu0 0.0
    %421 = vmatmul.mubr.f32.gmra.mxu0 %v301
    %v422 = vpop.f32.mrf.mxu0
    %v423 = vadd.f32 %v286, %v422
    %v424 = vpop.f32.mrf.mxu0
    %425 = vmatprep.mubr.f32.mxu0 0.0
    %426 = vmatmul.mubr.f32.gmra.mxu0 %v304
    %v427 = vpop.f32.mrf.mxu0
    %v428 = vadd.f32 %v286, %v427
    %v429 = vpop.f32.mrf.mxu0
    %430 = vmatprep.mubr.f32.mxu0 0.0
    %431 = vmatmul.mubr.f32.gmra.mxu0 %v307
    %v432 = vpop.f32.mrf.mxu0
    %v433 = vadd.f32 %v286, %v432
    %v434 = vpop.f32.mrf.mxu0
    %435 = vmatprep.mubr.f32.mxu0 0.0
    %436 = vmatmul.mubr.f32.gmra.mxu0 %v310
    %v437 = vpop.f32.mrf.mxu0
    %v438 = vadd.f32 %v286, %v437
    %v439 = vpop.f32.mrf.mxu0
    %440 = vmatprep.mubr.f32.mxu0 0.0
    %441 = vmatmul.mubr.f32.gmra.mxu0 %v313
    %v442 = vpop.f32.mrf.mxu0
    %v443 = vadd.f32 %v286, %v442
    %v444 = vpop.f32.mrf.mxu0
    %445 = vmatprep.mubr.f32.mxu0 0.0
    %446 = vmatmul.mubr.f32.gmra.mxu0 %v316
    %v447 = vpop.f32.mrf.mxu0
    %v448 = vadd.f32 %v286, %v447
    %v449 = vpop.f32.mrf.mxu0
    %450 = vmatprep.mubr.f32.mxu0 0.0
    %451 = vmatmul.mubr.f32.gmra.mxu0 %v319
    %v452 = vpop.f32.mrf.mxu0
    %v453 = vadd.f32 %v286, %v452
    %v454 = vpop.f32.mrf.mxu0
    %455 = vmatprep.mubr.f32.mxu0 0.0
    %456 = vmatmul.mubr.f32.gmra.mxu0 %v322
    %v457 = vpop.f32.mrf.mxu0
    %v458 = vadd.f32 %v286, %v457
    %v459 = vpop.f32.mrf.mxu0
    %460 = vmatprep.mubr.f32.mxu0 0.0
    %461 = vmatmul.mubr.f32.gmra.mxu0 %v325
    %v462 = vpop.f32.mrf.mxu0
    %v463 = vadd.f32 %v286, %v462
    %v464 = vpop.f32.mrf.mxu0
    %465 = vmatprep.mubr.f32.mxu0 0.0
    %466 = vmatmul.mubr.f32.gmra.mxu0 %v328
    %v467 = vpop.f32.mrf.mxu0
    %v468 = vadd.f32 %v286, %v467
    %v469 = vpop.f32.mrf.mxu0
    %470 = vmatprep.mubr.f32.mxu0 0.0
    %471 = vmatmul.mubr.f32.gmra.mxu0 %v331
    %v472 = vpop.f32.mrf.mxu0
    %v473 = vadd.f32 %v286, %v472
    %v474 = vpop.f32.mrf.mxu0
    %475 = vmatprep.mubr.f32.mxu0 0.0
    %476 = vmatmul.mubr.f32.gmra.mxu0 %v334
    %v477 = vpop.f32.mrf.mxu0
    %v478 = vadd.f32 %v286, %v477
    %v479 = vpop.f32.mrf.mxu0
    %480 = vdwg.mxu0
    %v481 = vmax.f32 %v403, 0.0
    %v482 = vmax.f32 %v408, 0.0
    %v483 = vmax.f32 %v413, 0.0
    %v484 = vmax.f32 %v418, 0.0
    %v485 = vmax.f32 %v423, 0.0
    %v486 = vmax.f32 %v428, 0.0
    %v487 = vmax.f32 %v433, 0.0
    %v488 = vmax.f32 %v438, 0.0
    %v489 = vmax.f32 %v443, 0.0
    %v490 = vmax.f32 %v448, 0.0
    %v491 = vmax.f32 %v453, 0.0
    %v492 = vmax.f32 %v458, 0.0
    %v493 = vmax.f32 %v463, 0.0
    %v494 = vmax.f32 %v468, 0.0
    %v495 = vmax.f32 %v473, 0.0
    %v496 = vmax.f32 %v478, 0.0
    %v497 = vld [vmem:[%s5] sm:$0xf]
    %v498 = vld [vmem:[%s5 + $0x4] sm:$0xf]
    %v499 = vlaneseq
    %v500 = vshrl.u32 %v499, 7
    %v501 = vsub.s32 0, %v500
    %v502 = vrot.slane %v497, %v501
    %504 = vrot.lane.b32.xlu0 %v502, 32
    %v505 = vpop.permute.xlu0 %504
    %v507 = vmul.f32 %v40, %v505
    %v508 = vmul.f32 %v41, %v505
    %v509 = vmul.f32 %v42, %v505
    %v510 = vmul.f32 %v43, %v505
    %v511 = vmul.f32 %v44, %v505
    %v512 = vmul.f32 %v45, %v505
    %v513 = vmul.f32 %v46, %v505
    %v514 = vmul.f32 %v47, %v505
    %v515 = vmul.f32 %v48, %v505
    %v516 = vmul.f32 %v49, %v505
    %v517 = vmul.f32 %v50, %v505
    %v518 = vmul.f32 %v51, %v505
    %v519 = vmul.f32 %v52, %v505
    %v520 = vmul.f32 %v53, %v505
    %v521 = vmul.f32 %v54, %v505
    %v522 = vmul.f32 %v55, %v505
    %539 = vrot.lane.b32.xlu0 %v507, 96
    %v540 = vpop.permute.xlu0 %539
    %541 = vrot.lane.b32.xlu0 %v508, 96
    %v542 = vpop.permute.xlu0 %541
    %543 = vrot.lane.b32.xlu0 %v509, 96
    %v544 = vpop.permute.xlu0 %543
    %545 = vrot.lane.b32.xlu0 %v510, 96
    %v546 = vpop.permute.xlu0 %545
    %547 = vrot.lane.b32.xlu0 %v511, 96
    %v548 = vpop.permute.xlu0 %547
    %549 = vrot.lane.b32.xlu0 %v512, 96
    %v550 = vpop.permute.xlu0 %549
    %551 = vrot.lane.b32.xlu0 %v513, 96
    %v552 = vpop.permute.xlu0 %551
    %553 = vrot.lane.b32.xlu0 %v514, 96
    %v554 = vpop.permute.xlu0 %553
    %555 = vrot.lane.b32.xlu0 %v515, 96
    %v556 = vpop.permute.xlu0 %555
    %557 = vrot.lane.b32.xlu0 %v516, 96
    %v558 = vpop.permute.xlu0 %557
    %559 = vrot.lane.b32.xlu0 %v517, 96
    %v560 = vpop.permute.xlu0 %559
    %561 = vrot.lane.b32.xlu0 %v518, 96
    %v562 = vpop.permute.xlu0 %561
    %563 = vrot.lane.b32.xlu0 %v519, 96
    %v564 = vpop.permute.xlu0 %563
    %565 = vrot.lane.b32.xlu0 %v520, 96
    %v566 = vpop.permute.xlu0 %565
    %567 = vrot.lane.b32.xlu0 %v521, 96
    %v568 = vpop.permute.xlu0 %567
    %569 = vrot.lane.b32.xlu0 %v522, 96
    %v570 = vpop.permute.xlu0 %569
    %v587 = vsel %vm67, %v540, 0.0
    %588 = vadd.xlane.f32.xlu0 %v587
    %v589 = vpop.xlane.xlu0 %588
    %v590 = vsel %vm67, %v542, 0.0
    %591 = vadd.xlane.f32.xlu0 %v590
    %v592 = vpop.xlane.xlu0 %591
    %v593 = vsel %vm67, %v544, 0.0
    %594 = vadd.xlane.f32.xlu0 %v593
    %v595 = vpop.xlane.xlu0 %594
    %v596 = vsel %vm67, %v546, 0.0
    %597 = vadd.xlane.f32.xlu0 %v596
    %v598 = vpop.xlane.xlu0 %597
    %v599 = vsel %vm67, %v548, 0.0
    %600 = vadd.xlane.f32.xlu0 %v599
    %v601 = vpop.xlane.xlu0 %600
    %v602 = vsel %vm67, %v550, 0.0
    %603 = vadd.xlane.f32.xlu0 %v602
    %v604 = vpop.xlane.xlu0 %603
    %v605 = vsel %vm67, %v552, 0.0
    %606 = vadd.xlane.f32.xlu0 %v605
    %v607 = vpop.xlane.xlu0 %606
    %v608 = vsel %vm67, %v554, 0.0
    %609 = vadd.xlane.f32.xlu0 %v608
    %v610 = vpop.xlane.xlu0 %609
    %v611 = vsel %vm67, %v556, 0.0
    %612 = vadd.xlane.f32.xlu0 %v611
    %v613 = vpop.xlane.xlu0 %612
    %v614 = vsel %vm67, %v558, 0.0
    %615 = vadd.xlane.f32.xlu0 %v614
    %v616 = vpop.xlane.xlu0 %615
    %v617 = vsel %vm67, %v560, 0.0
    %618 = vadd.xlane.f32.xlu0 %v617
    %v619 = vpop.xlane.xlu0 %618
    %v620 = vsel %vm67, %v562, 0.0
    %621 = vadd.xlane.f32.xlu0 %v620
    %v622 = vpop.xlane.xlu0 %621
    %v623 = vsel %vm67, %v564, 0.0
    %624 = vadd.xlane.f32.xlu0 %v623
    %v625 = vpop.xlane.xlu0 %624
    %v626 = vsel %vm67, %v566, 0.0
    %627 = vadd.xlane.f32.xlu0 %v626
    %v628 = vpop.xlane.xlu0 %627
    %v629 = vsel %vm67, %v568, 0.0
    %630 = vadd.xlane.f32.xlu0 %v629
    %v631 = vpop.xlane.xlu0 %630
    %v632 = vsel %vm67, %v570, 0.0
    %633 = vadd.xlane.f32.xlu0 %v632
    %v634 = vpop.xlane.xlu0 %633
    %v635 = vlaneseq
    %v636 = vshrl.u32 %v635, 7
    %v637 = vsub.s32 1, %v636
    %v638 = vrot.slane %v497, %v637
    %640 = vrot.lane.b32.xlu0 %v638, 32
    %v641 = vpop.permute.xlu0 %640
    %v643 = vmul.f32 %v40, %v641
    %v644 = vmul.f32 %v41, %v641
    %v645 = vmul.f32 %v42, %v641
    %v646 = vmul.f32 %v43, %v641
    %v647 = vmul.f32 %v44, %v641
    %v648 = vmul.f32 %v45, %v641
    %v649 = vmul.f32 %v46, %v641
    %v650 = vmul.f32 %v47, %v641
    %v651 = vmul.f32 %v48, %v641
    %v652 = vmul.f32 %v49, %v641
    %v653 = vmul.f32 %v50, %v641
    %v654 = vmul.f32 %v51, %v641
    %v655 = vmul.f32 %v52, %v641
    %v656 = vmul.f32 %v53, %v641
    %v657 = vmul.f32 %v54, %v641
    %v658 = vmul.f32 %v55, %v641
    %675 = vrot.lane.b32.xlu0 %v643, 96
    %v676 = vpop.permute.xlu0 %675
    %677 = vrot.lane.b32.xlu0 %v644, 96
    %v678 = vpop.permute.xlu0 %677
    %679 = vrot.lane.b32.xlu0 %v645, 96
    %v680 = vpop.permute.xlu0 %679
    %681 = vrot.lane.b32.xlu0 %v646, 96
    %v682 = vpop.permute.xlu0 %681
    %683 = vrot.lane.b32.xlu0 %v647, 96
    %v684 = vpop.permute.xlu0 %683
    %685 = vrot.lane.b32.xlu0 %v648, 96
    %v686 = vpop.permute.xlu0 %685
    %687 = vrot.lane.b32.xlu0 %v649, 96
    %v688 = vpop.permute.xlu0 %687
    %689 = vrot.lane.b32.xlu0 %v650, 96
    %v690 = vpop.permute.xlu0 %689
    %691 = vrot.lane.b32.xlu0 %v651, 96
    %v692 = vpop.permute.xlu0 %691
    %693 = vrot.lane.b32.xlu0 %v652, 96
    %v694 = vpop.permute.xlu0 %693
    %695 = vrot.lane.b32.xlu0 %v653, 96
    %v696 = vpop.permute.xlu0 %695
    %697 = vrot.lane.b32.xlu0 %v654, 96
    %v698 = vpop.permute.xlu0 %697
    %699 = vrot.lane.b32.xlu0 %v655, 96
    %v700 = vpop.permute.xlu0 %699
    %701 = vrot.lane.b32.xlu0 %v656, 96
    %v702 = vpop.permute.xlu0 %701
    %703 = vrot.lane.b32.xlu0 %v657, 96
    %v704 = vpop.permute.xlu0 %703
    %705 = vrot.lane.b32.xlu0 %v658, 96
    %v706 = vpop.permute.xlu0 %705
    %v723 = vsel %vm67, %v676, 0.0
    %724 = vadd.xlane.f32.xlu0 %v723
    %v725 = vpop.xlane.xlu0 %724
    %v726 = vsel %vm67, %v678, 0.0
    %727 = vadd.xlane.f32.xlu0 %v726
    %v728 = vpop.xlane.xlu0 %727
    %v729 = vsel %vm67, %v680, 0.0
    %730 = vadd.xlane.f32.xlu0 %v729
    %v731 = vpop.xlane.xlu0 %730
    %v732 = vsel %vm67, %v682, 0.0
    %733 = vadd.xlane.f32.xlu0 %v732
    %v734 = vpop.xlane.xlu0 %733
    %v735 = vsel %vm67, %v684, 0.0
    %736 = vadd.xlane.f32.xlu0 %v735
    %v737 = vpop.xlane.xlu0 %736
    %v738 = vsel %vm67, %v686, 0.0
    %739 = vadd.xlane.f32.xlu0 %v738
    %v740 = vpop.xlane.xlu0 %739
    %v741 = vsel %vm67, %v688, 0.0
    %742 = vadd.xlane.f32.xlu0 %v741
    %v743 = vpop.xlane.xlu0 %742
    %v744 = vsel %vm67, %v690, 0.0
    %745 = vadd.xlane.f32.xlu0 %v744
    %v746 = vpop.xlane.xlu0 %745
    %v747 = vsel %vm67, %v692, 0.0
    %748 = vadd.xlane.f32.xlu0 %v747
    %v749 = vpop.xlane.xlu0 %748
    %v750 = vsel %vm67, %v694, 0.0
    %751 = vadd.xlane.f32.xlu0 %v750
    %v752 = vpop.xlane.xlu0 %751
    %v753 = vsel %vm67, %v696, 0.0
    %754 = vadd.xlane.f32.xlu0 %v753
    %v755 = vpop.xlane.xlu0 %754
    %v756 = vsel %vm67, %v698, 0.0
    %757 = vadd.xlane.f32.xlu0 %v756
    %v758 = vpop.xlane.xlu0 %757
    %v759 = vsel %vm67, %v700, 0.0
    %760 = vadd.xlane.f32.xlu0 %v759
    %v761 = vpop.xlane.xlu0 %760
    %v762 = vsel %vm67, %v702, 0.0
    %763 = vadd.xlane.f32.xlu0 %v762
    %v764 = vpop.xlane.xlu0 %763
    %v765 = vsel %vm67, %v704, 0.0
    %766 = vadd.xlane.f32.xlu0 %v765
    %v767 = vpop.xlane.xlu0 %766
    %v768 = vsel %vm67, %v706, 0.0
    %769 = vadd.xlane.f32.xlu0 %v768
    %v770 = vpop.xlane.xlu0 %769
    %v771 = vmul.f32 %v40, %v589
    %v772 = vmul.f32 %v41, %v592
    %v773 = vmul.f32 %v42, %v595
    %v774 = vmul.f32 %v43, %v598
    %v775 = vmul.f32 %v44, %v601
    %v776 = vmul.f32 %v45, %v604
    %v777 = vmul.f32 %v46, %v607
    %v778 = vmul.f32 %v47, %v610
    %v779 = vmul.f32 %v48, %v613
    %v780 = vmul.f32 %v49, %v616
    %v781 = vmul.f32 %v50, %v619
    %v782 = vmul.f32 %v51, %v622
    %v783 = vmul.f32 %v52, %v625
    %v784 = vmul.f32 %v53, %v628
    %v785 = vmul.f32 %v54, %v631
    %v786 = vmul.f32 %v55, %v634
    %v787 = vlaneseq
    %v788 = vshrl.u32 %v787, 7
    %v789 = vsub.s32 2, %v788
    %v790 = vrot.slane %v497, %v789
    %792 = vrot.lane.b32.xlu0 %v790, 64
    %v793 = vpop.permute.xlu0 %792
    %v795 = vadd.f32 %v771, %v793
    %v796 = vadd.f32 %v772, %v793
    %v797 = vadd.f32 %v773, %v793
    %v798 = vadd.f32 %v774, %v793
    %v799 = vadd.f32 %v775, %v793
    %v800 = vadd.f32 %v776, %v793
    %v801 = vadd.f32 %v777, %v793
    %v802 = vadd.f32 %v778, %v793
    %v803 = vadd.f32 %v779, %v793
    %v804 = vadd.f32 %v780, %v793
    %v805 = vadd.f32 %v781, %v793
    %v806 = vadd.f32 %v782, %v793
    %v807 = vadd.f32 %v783, %v793
    %v808 = vadd.f32 %v784, %v793
    %v809 = vadd.f32 %v785, %v793
    %v810 = vadd.f32 %v786, %v793
    %v811 = vmul.f32 %v40, %v725
    %v812 = vmul.f32 %v41, %v728
    %v813 = vmul.f32 %v42, %v731
    %v814 = vmul.f32 %v43, %v734
    %v815 = vmul.f32 %v44, %v737
    %v816 = vmul.f32 %v45, %v740
    %v817 = vmul.f32 %v46, %v743
    %v818 = vmul.f32 %v47, %v746
    %v819 = vmul.f32 %v48, %v749
    %v820 = vmul.f32 %v49, %v752
    %v821 = vmul.f32 %v50, %v755
    %v822 = vmul.f32 %v51, %v758
    %v823 = vmul.f32 %v52, %v761
    %v824 = vmul.f32 %v53, %v764
    %v825 = vmul.f32 %v54, %v767
    %v826 = vmul.f32 %v55, %v770
    %v827 = vlaneseq
    %v828 = vshrl.u32 %v827, 7
    %v829 = vsub.s32 3, %v828
    %v830 = vrot.slane %v497, %v829
    %832 = vrot.lane.b32.xlu0 %v830, 64
    %v833 = vpop.permute.xlu0 %832
    %v835 = vadd.f32 %v811, %v833
    %v836 = vadd.f32 %v812, %v833
    %v837 = vadd.f32 %v813, %v833
    %v838 = vadd.f32 %v814, %v833
    %v839 = vadd.f32 %v815, %v833
    %v840 = vadd.f32 %v816, %v833
    %v841 = vadd.f32 %v817, %v833
    %v842 = vadd.f32 %v818, %v833
    %v843 = vadd.f32 %v819, %v833
    %v844 = vadd.f32 %v820, %v833
    %v845 = vadd.f32 %v821, %v833
    %v846 = vadd.f32 %v822, %v833
    %v847 = vadd.f32 %v823, %v833
    %v848 = vadd.f32 %v824, %v833
    %v849 = vadd.f32 %v825, %v833
    %v850 = vadd.f32 %v826, %v833
    %v851 = vlaneseq
    %v852 = vshrl.u32 %v851, 7
    %v853 = vsub.s32 0, %v852
    %v854 = vrot.slane %v498, %v853
    %856 = vrot.lane.b32.xlu0 %v854, 64
    %v857 = vpop.permute.xlu0 %856
    %v859 = vmul.f32 %v795, %v857
    %v860 = vmul.f32 %v796, %v857
    %v861 = vmul.f32 %v797, %v857
    %v862 = vmul.f32 %v798, %v857
    %v863 = vmul.f32 %v799, %v857
    %v864 = vmul.f32 %v800, %v857
    %v865 = vmul.f32 %v801, %v857
    %v866 = vmul.f32 %v802, %v857
    %v867 = vmul.f32 %v803, %v857
    %v868 = vmul.f32 %v804, %v857
    %v869 = vmul.f32 %v805, %v857
    %v870 = vmul.f32 %v806, %v857
    %v871 = vmul.f32 %v807, %v857
    %v872 = vmul.f32 %v808, %v857
    %v873 = vmul.f32 %v809, %v857
    %v874 = vmul.f32 %v810, %v857
    %891 = vrot.lane.b32.xlu0 %v859, 64
    %v892 = vpop.permute.xlu0 %891
    %893 = vrot.lane.b32.xlu0 %v860, 64
    %v894 = vpop.permute.xlu0 %893
    %895 = vrot.lane.b32.xlu0 %v861, 64
    %v896 = vpop.permute.xlu0 %895
    %897 = vrot.lane.b32.xlu0 %v862, 64
    %v898 = vpop.permute.xlu0 %897
    %899 = vrot.lane.b32.xlu0 %v863, 64
    %v900 = vpop.permute.xlu0 %899
    %901 = vrot.lane.b32.xlu0 %v864, 64
    %v902 = vpop.permute.xlu0 %901
    %903 = vrot.lane.b32.xlu0 %v865, 64
    %v904 = vpop.permute.xlu0 %903
    %905 = vrot.lane.b32.xlu0 %v866, 64
    %v906 = vpop.permute.xlu0 %905
    %907 = vrot.lane.b32.xlu0 %v867, 64
    %v908 = vpop.permute.xlu0 %907
    %909 = vrot.lane.b32.xlu0 %v868, 64
    %v910 = vpop.permute.xlu0 %909
    %911 = vrot.lane.b32.xlu0 %v869, 64
    %v912 = vpop.permute.xlu0 %911
    %913 = vrot.lane.b32.xlu0 %v870, 64
    %v914 = vpop.permute.xlu0 %913
    %915 = vrot.lane.b32.xlu0 %v871, 64
    %v916 = vpop.permute.xlu0 %915
    %917 = vrot.lane.b32.xlu0 %v872, 64
    %v918 = vpop.permute.xlu0 %917
    %919 = vrot.lane.b32.xlu0 %v873, 64
    %v920 = vpop.permute.xlu0 %919
    %921 = vrot.lane.b32.xlu0 %v874, 64
    %v922 = vpop.permute.xlu0 %921
    %v939 = vsel %vm67, %v892, 0.0
    %940 = vadd.xlane.f32.xlu0 %v939
    %v941 = vpop.xlane.xlu0 %940
    %v942 = vsel %vm67, %v894, 0.0
    %943 = vadd.xlane.f32.xlu0 %v942
    %v944 = vpop.xlane.xlu0 %943
    %v945 = vsel %vm67, %v896, 0.0
    %946 = vadd.xlane.f32.xlu0 %v945
    %v947 = vpop.xlane.xlu0 %946
    %v948 = vsel %vm67, %v898, 0.0
    %949 = vadd.xlane.f32.xlu0 %v948
    %v950 = vpop.xlane.xlu0 %949
    %v951 = vsel %vm67, %v900, 0.0
    %952 = vadd.xlane.f32.xlu0 %v951
    %v953 = vpop.xlane.xlu0 %952
    %v954 = vsel %vm67, %v902, 0.0
    %955 = vadd.xlane.f32.xlu0 %v954
    %v956 = vpop.xlane.xlu0 %955
    %v957 = vsel %vm67, %v904, 0.0
    %958 = vadd.xlane.f32.xlu0 %v957
    %v959 = vpop.xlane.xlu0 %958
    %v960 = vsel %vm67, %v906, 0.0
    %961 = vadd.xlane.f32.xlu0 %v960
    %v962 = vpop.xlane.xlu0 %961
    %v963 = vsel %vm67, %v908, 0.0
    %964 = vadd.xlane.f32.xlu0 %v963
    %v965 = vpop.xlane.xlu0 %964
    %v966 = vsel %vm67, %v910, 0.0
    %967 = vadd.xlane.f32.xlu0 %v966
    %v968 = vpop.xlane.xlu0 %967
    %v969 = vsel %vm67, %v912, 0.0
    %970 = vadd.xlane.f32.xlu0 %v969
    %v971 = vpop.xlane.xlu0 %970
    %v972 = vsel %vm67, %v914, 0.0
    %973 = vadd.xlane.f32.xlu0 %v972
    %v974 = vpop.xlane.xlu0 %973
    %v975 = vsel %vm67, %v916, 0.0
    %976 = vadd.xlane.f32.xlu0 %v975
    %v977 = vpop.xlane.xlu0 %976
    %v978 = vsel %vm67, %v918, 0.0
    %979 = vadd.xlane.f32.xlu0 %v978
    %v980 = vpop.xlane.xlu0 %979
    %v981 = vsel %vm67, %v920, 0.0
    %982 = vadd.xlane.f32.xlu0 %v981
    %v983 = vpop.xlane.xlu0 %982
    %v984 = vsel %vm67, %v922, 0.0
    %985 = vadd.xlane.f32.xlu0 %v984
    %v986 = vpop.xlane.xlu0 %985
    %v987 = vmul.f32 %v835, %v941
    %v988 = vmul.f32 %v836, %v944
    %v989 = vmul.f32 %v837, %v947
    %v990 = vmul.f32 %v838, %v950
    %v991 = vmul.f32 %v839, %v953
    %v992 = vmul.f32 %v840, %v956
    %v993 = vmul.f32 %v841, %v959
    %v994 = vmul.f32 %v842, %v962
    %v995 = vmul.f32 %v843, %v965
    %v996 = vmul.f32 %v844, %v968
    %v997 = vmul.f32 %v845, %v971
    %v998 = vmul.f32 %v846, %v974
    %v999 = vmul.f32 %v847, %v977
    %v1000 = vmul.f32 %v848, %v980
    %v1001 = vmul.f32 %v849, %v983
    %v1002 = vmul.f32 %v850, %v986
    %v1003 = vlaneseq
    %v1004 = vshrl.u32 %v1003, 7
    %v1005 = vsub.s32 2, %v1004
    %v1006 = vrot.slane %v498, %v1005
    %1008 = vrot.lane.b32.xlu0 %v1006, 64
    %v1009 = vpop.permute.xlu0 %1008
    %v1011 = vadd.f32 %v987, %v1009
    %v1012 = vadd.f32 %v988, %v1009
    %v1013 = vadd.f32 %v989, %v1009
    %v1014 = vadd.f32 %v990, %v1009
    %v1015 = vadd.f32 %v991, %v1009
    %v1016 = vadd.f32 %v992, %v1009
    %v1017 = vadd.f32 %v993, %v1009
    %v1018 = vadd.f32 %v994, %v1009
    %v1019 = vadd.f32 %v995, %v1009
    %v1020 = vadd.f32 %v996, %v1009
    %v1021 = vadd.f32 %v997, %v1009
    %v1022 = vadd.f32 %v998, %v1009
    %v1023 = vadd.f32 %v999, %v1009
    %v1024 = vadd.f32 %v1000, %v1009
    %v1025 = vadd.f32 %v1001, %v1009
    %v1026 = vadd.f32 %v1002, %v1009
    %1043 = vrot.lane.b32.xlu0 %v1011, 64
    %v1044 = vpop.permute.xlu0 %1043
    %1045 = vrot.lane.b32.xlu0 %v1012, 64
    %v1046 = vpop.permute.xlu0 %1045
    %1047 = vrot.lane.b32.xlu0 %v1013, 64
    %v1048 = vpop.permute.xlu0 %1047
    %1049 = vrot.lane.b32.xlu0 %v1014, 64
    %v1050 = vpop.permute.xlu0 %1049
    %1051 = vrot.lane.b32.xlu0 %v1015, 64
    %v1052 = vpop.permute.xlu0 %1051
    %1053 = vrot.lane.b32.xlu0 %v1016, 64
    %v1054 = vpop.permute.xlu0 %1053
    %1055 = vrot.lane.b32.xlu0 %v1017, 64
    %v1056 = vpop.permute.xlu0 %1055
    %1057 = vrot.lane.b32.xlu0 %v1018, 64
    %v1058 = vpop.permute.xlu0 %1057
    %1059 = vrot.lane.b32.xlu0 %v1019, 64
    %v1060 = vpop.permute.xlu0 %1059
    %1061 = vrot.lane.b32.xlu0 %v1020, 64
    %v1062 = vpop.permute.xlu0 %1061
    %1063 = vrot.lane.b32.xlu0 %v1021, 64
    %v1064 = vpop.permute.xlu0 %1063
    %1065 = vrot.lane.b32.xlu0 %v1022, 64
    %v1066 = vpop.permute.xlu0 %1065
    %1067 = vrot.lane.b32.xlu0 %v1023, 64
    %v1068 = vpop.permute.xlu0 %1067
    %1069 = vrot.lane.b32.xlu0 %v1024, 64
    %v1070 = vpop.permute.xlu0 %1069
    %1071 = vrot.lane.b32.xlu0 %v1025, 64
    %v1072 = vpop.permute.xlu0 %1071
    %1073 = vrot.lane.b32.xlu0 %v1026, 64
    %v1074 = vpop.permute.xlu0 %1073
    %v1091 = vmul.f32 %v481, %v1044
    %v1092 = vmul.f32 %v482, %v1046
    %v1093 = vmul.f32 %v483, %v1048
    %v1094 = vmul.f32 %v484, %v1050
    %v1095 = vmul.f32 %v485, %v1052
    %v1096 = vmul.f32 %v486, %v1054
    %v1097 = vmul.f32 %v487, %v1056
    %v1098 = vmul.f32 %v488, %v1058
    %v1099 = vmul.f32 %v489, %v1060
    %v1100 = vmul.f32 %v490, %v1062
    %v1101 = vmul.f32 %v491, %v1064
    %v1102 = vmul.f32 %v492, %v1066
    %v1103 = vmul.f32 %v493, %v1068
    %v1104 = vmul.f32 %v494, %v1070
    %v1105 = vmul.f32 %v495, %v1072
    %v1106 = vmul.f32 %v496, %v1074
    %v1108 = vsel %vm67, 1.0, 0
    %v1111 = vsel %vm67, %v1091, 0
    %v1114 = vsel %vm67, %v1092, 0
    %v1117 = vsel %vm67, %v1093, 0
    %v1120 = vsel %vm67, %v1094, 0
    %v1123 = vsel %vm67, %v1095, 0
    %v1126 = vsel %vm67, %v1096, 0
    %v1129 = vsel %vm67, %v1097, 0
    %v1132 = vsel %vm67, %v1098, 0
    %v1135 = vsel %vm67, %v1099, 0
    %v1138 = vsel %vm67, %v1100, 0
    %v1141 = vsel %vm67, %v1101, 0
    %v1144 = vsel %vm67, %v1102, 0
    %v1147 = vsel %vm67, %v1103, 0
    %v1150 = vsel %vm67, %v1104, 0
    %v1153 = vsel %vm67, %v1105, 0
    %v1156 = vsel %vm67, %v1106, 0
    %1158 = vmatprep.subr.mxu0 0.0
    %1159 = vmatpush1.xpose.msra.mxu0 %v1156
    %1160 = vmatprep.subr.mxu0 0.0
    %1161 = vmatpush1.xpose.msra.mxu0 %v1153
    %1162 = vmatprep.subr.mxu0 0.0
    %1163 = vmatpush1.xpose.msra.mxu0 %v1150
    %1164 = vmatprep.subr.mxu0 0.0
    %1165 = vmatpush1.xpose.msra.mxu0 %v1147
    %1166 = vmatprep.subr.mxu0 0.0
    %1167 = vmatpush1.xpose.msra.mxu0 %v1144
    %1168 = vmatprep.subr.mxu0 0.0
    %1169 = vmatpush1.xpose.msra.mxu0 %v1141
    %1170 = vmatprep.subr.mxu0 0.0
    %1171 = vmatpush1.xpose.msra.mxu0 %v1138
    %1172 = vmatprep.subr.mxu0 0.0
    %1173 = vmatpush1.xpose.msra.mxu0 %v1135
    %1174 = vmatprep.subr.mxu0 0.0
    %1175 = vmatpush1.xpose.msra.mxu0 %v1132
    %1176 = vmatprep.subr.mxu0 0.0
    %1177 = vmatpush1.xpose.msra.mxu0 %v1129
    %1178 = vmatprep.subr.mxu0 0.0
    %1179 = vmatpush1.xpose.msra.mxu0 %v1126
    %1180 = vmatprep.subr.mxu0 0.0
    %1181 = vmatpush1.xpose.msra.mxu0 %v1123
    %1182 = vmatprep.subr.mxu0 0.0
    %1183 = vmatpush1.xpose.msra.mxu0 %v1120
    %1184 = vmatprep.subr.mxu0 0.0
    %1185 = vmatpush1.xpose.msra.mxu0 %v1117
    %1186 = vmatprep.subr.mxu0 0.0
    %1187 = vmatpush1.xpose.msra.mxu0 %v1114
    %1188 = vmatprep.subr.mxu0 0.0
    %1189 = vmatpush1.xpose.msra.mxu0 %v1111
    %1190 = vmatprep.subr.mxu0 0.0
    %1191 = vmatpush2.xpose.msra.mxu0 0.0
    %1192 = vmatprep.subr.mxu0 0.0
    %1193 = vmatpush2.xpose.msra.mxu0 0.0
    %1194 = vmatprep.subr.mxu0 0.0
    %1195 = vmatpush2.xpose.msra.mxu0 0.0
    %1196 = vmatprep.subr.mxu0 0.0
    %1197 = vmatpush2.xpose.msra.mxu0 0.0
    %1198 = vmatprep.subr.mxu0 0.0
    %1199 = vmatpush2.xpose.msra.mxu0 0.0
    %1200 = vmatprep.subr.mxu0 0.0
    %1201 = vmatpush2.xpose.msra.mxu0 0.0
    %1202 = vmatprep.subr.mxu0 0.0
    %1203 = vmatpush2.xpose.msra.mxu0 0.0
    %1204 = vmatprep.subr.mxu0 0.0
    %1205 = vmatpush2.xpose.msra.mxu0 0.0
    %1206 = vmatprep.subr.mxu0 0.0
    %1207 = vmatpush2.xpose.msra.mxu0 0.0
    %1208 = vmatprep.subr.mxu0 0.0
    %1209 = vmatpush2.xpose.msra.mxu0 0.0
    %1210 = vmatprep.subr.mxu0 0.0
    %1211 = vmatpush2.xpose.msra.mxu0 0.0
    %1212 = vmatprep.subr.mxu0 0.0
    %1213 = vmatpush2.xpose.msra.mxu0 0.0
    %1214 = vmatprep.subr.mxu0 0.0
    %1215 = vmatpush2.xpose.msra.mxu0 0.0
    %1216 = vmatprep.subr.mxu0 0.0
    %1217 = vmatpush2.xpose.msra.mxu0 0.0
    %1218 = vmatprep.subr.mxu0 0.0
    %1219 = vmatpush2.xpose.msra.mxu0 0.0
    %1220 = vmatprep.subr.mxu0 0.0
    %1221 = vmatpush2.xpose.msra.mxu0 0.0
    %1222 = vmatprep.mubr.f32.mxu0 0.0
    %1223 = vmatmul.mubr.f32.gmra.mxu0 %v1108
    %v1224 = vpop.f32.mrf.mxu0
    %v1225 = vadd.f32 0.0, %v1224
    %v1226 = vpop.f32.mrf.mxu0
    %1227 = vdwg.mxu0
    %1228 = vst [vmem:[#allocation2] sm:$0x1] %v1225
    // Predicated region
    $region26: #{tpu_custom_call.1} parent=1 // pred_check
      _
    $region27: #{tpu_custom_call.1} parent=1 // pred_check_branch
      %1230 = sbr.rel (0) target = $region29
    $region28: #{tpu_custom_call.1} parent=1 // pred_region
      %s1232 = ssub.s32 16, 16
      %1233 = vsyncadd [#allocation3], %s1232
      %s1235 = sshll.u32 [#allocation2], 4
      %s1236 = int_to_ptr.vmem [resolvable:$true] %s1235
      %1238 = dma.vmem_to_hbm [thread:$0]  %s1236, 16, %s6, [#allocation3]
    $region29: #{tpu_custom_call.1} parent=1 // pred_fallthru
      _
    // Predicated region
    $region30: #{tpu_custom_call.1} parent=1 // pred_check
      _
    $region31: #{tpu_custom_call.1} parent=1 // pred_check_branch
      %1240 = sbr.rel (0) target = $region33
    $region32: #{tpu_custom_call.1} parent=1 // pred_region
      %1241 = dma.done [#allocation3], 16
    $region33: #{tpu_custom_call.1} parent=1 // pred_fallthru
      _
    %1242 = vsyncpa [#allocation3], 1

</llo_original>
